<compile_context>
chip_gen: v7x
topology: tpu7x:2x2x1
jax: 0.10.0
libtpu: 0.0.40
codegen_flags: <defaults>
</compile_context>

<pallas_src>
import jax
import jax.numpy as jnp
from jax.experimental import pallas as pl
from jax.experimental.pallas import tpu as pltpu


def _round_up(n, m):
    return ((n + m - 1) // m) * m


def _vmem_capacity_bytes():
    try:
        return int(pltpu.get_tpu_info().vmem_capacity_bytes)
    except Exception:
        return 64 * 1024 * 1024  # conservative default (v7x per-TensorCore)


def swiglu_kernel(x_ref, w1g_ref, b1g_ref, w1u_ref, b1u_ref, w2_ref, b2_ref,
                  o_ref, acc_ref):
    # One (token-tile, H-tile) grid step.  Shapes (all lane-dense):
    #   x_ref : (tm, Ep)    w1g/w1u : (Ep, th)    b1g/b1u : (1, th)  f32
    #   w2_ref: (th, Ep)    b2      : (1, Ep) f32
    #   o_ref : (tm, Ep)    acc_ref : (tm, Ep) f32, resident across the H axis
    h = pl.program_id(1)

    @pl.when(h == 0)
    def _init():
        acc_ref[...] = jnp.zeros_like(acc_ref)

    x = x_ref[...].astype(w1g_ref.dtype)          # MXU-native dtype (bf16/f32)
    g = jnp.dot(x, w1g_ref[...], preferred_element_type=jnp.float32) + b1g_ref[...]
    u = jnp.dot(x, w1u_ref[...], preferred_element_type=jnp.float32) + b1u_ref[...]
    g = g * jax.lax.logistic(g)                   # SiLU in f32 (EUP), in place
    g = g * u                                     # keep live ranges short
    acc_ref[...] += jnp.dot(g.astype(w2_ref.dtype), w2_ref[...],
                            preferred_element_type=jnp.float32)

    @pl.when(h == pl.num_programs(1) - 1)
    def _finalize():
        o_ref[...] = (acc_ref[...] + b2_ref[...]).astype(o_ref.dtype)


def prepare_swiglu_params(w1, b1, w2, b2, *, param_dtype=None):
    """One-time parameter prep (hoisted out of the per-call path).

    w1: (E, 2H), b1: (2H,), w2: (H, E), b2: (E,) in math layout (x @ W + b),
    i.e. the transpose of PyTorch nn.Linear.weight.  Splits the fused projection
    into gate/up halves (matching torch chunk(2, dim=-1)), zero-pads feature dims
    to multiples of 128 (exact: padded rows/cols contribute nothing) and casts
    the weights to `param_dtype` (bf16 recommended).  Biases stay f32.
    """
    E, twoH = w1.shape
    H = twoH // 2
    assert w2.shape == (H, E) and b1.shape == (twoH,) and b2.shape == (E,)
    if param_dtype is None:
        param_dtype = w1.dtype

    Ep = _round_up(E, 128)
    Hp = _round_up(H, 128)

    w1g, w1u = w1[:, :H], w1[:, H:]
    b1g, b1u = b1[:H], b1[H:]

    pad2 = lambda a, r, c: jnp.pad(a, ((0, r - a.shape[0]), (0, c - a.shape[1])))
    return dict(
        w1g=pad2(w1g, Ep, Hp).astype(param_dtype),
        w1u=pad2(w1u, Ep, Hp).astype(param_dtype),
        w2=pad2(w2, Hp, Ep).astype(param_dtype),
        b1g=jnp.pad(b1g, (0, Hp - H)).astype(jnp.float32).reshape(1, Hp),
        b1u=jnp.pad(b1u, (0, Hp - H)).astype(jnp.float32).reshape(1, Hp),
        b2=jnp.pad(b2, (0, Ep - E)).astype(jnp.float32).reshape(1, Ep),
        E=E, H=H, Ep=Ep, Hp=Hp,
    )


def _select_tiles(tokens, Ep, Hp, xsize, wsize, tm_req, sublane, budget):
    """Pick (tm, th, resident, vmem_estimate).  resident => weights fit VMEM
    single-buffered (nh == 1, fetched once; no per-token-tile weight DMA)."""
    def est(tm, th, wbuf):
        return (4 * tm * Ep * xsize            # x + out tiles, double-buffered
                + 4 * tm * Ep                  # f32 accumulator scratch
                + wbuf * 3 * Ep * th * wsize   # w1g + w1u + w2 blocks
                + wbuf * 2 * th * 4            # b1g / b1u blocks
                + Ep * 4                       # b2 (single-buffered)
                + 8 * tm * th)                 # f32 g/u intermediates headroom

    tm = min(_round_up(tm_req, sublane), _round_up(tokens, sublane))
    while True:
        if est(tm, Hp, 1) <= budget:           # resident fast path (v5e/v6e)
            return tm, Hp, True, est(tm, Hp, 1)
        per_th = 6 * Ep * wsize + 8 * tm + 8
        fixed = 4 * tm * Ep * xsize + 4 * tm * Ep + Ep * 4
        th = (budget - fixed) // per_th if budget > fixed else 0
        th = min(Hp, (th // 128) * 128)
        if th >= 128:
            return tm, th, False, est(tm, th, 2)
        if tm <= sublane:
            # TODO(synk): E too large for a (tm, Ep) f32 accumulator at this VMEM
            # budget; would need an extra output-E grid axis.  Best-effort tiles.
            return tm, min(Hp, 128), False, est(tm, min(Hp, 128), 2)
        tm = max(sublane, _round_up(tm // 2, sublane))


def swiglu_pallas(x, params, *, tm=512):
    """SwiGLU forward.  x: (..., E); params from prepare_swiglu_params."""
    orig_shape = x.shape
    E, H, Ep, Hp = params["E"], params["H"], params["Ep"], params["Hp"]
    assert orig_shape[-1] == E
    x2d = x.reshape(-1, E)
    tokens = x2d.shape[0]

    xsize = jnp.dtype(x.dtype).itemsize
    wsize = jnp.dtype(params["w1g"].dtype).itemsize
    sublane = 8 * max(1, 4 // xsize)           # 8 f32 / 16 bf16 / 32 int8

    cap = _vmem_capacity_bytes()
    budget = min((cap * 7) // 8, 104 * 1024 * 1024)   # ~56 MiB v7x, ~104 MiB v5e/v6e
    tm, th, resident, est = _select_tiles(tokens, Ep, Hp, xsize, wsize,
                                          tm, sublane, budget)

    tokens_p = _round_up(tokens, tm)
    x2d = jnp.pad(x2d, ((0, tokens_p - tokens), (0, Ep - E)))

    ntok = tokens_p // tm
    nh = Hp // th
    grid = (ntok, nh)   # token axis parallel (megacore), H axis = inner reduction

    # Grid-invariant operands get a single VMEM buffer; streamed weight blocks
    # keep the default double-buffering so DMA overlaps the MXU.
    wmode = dict(pipeline_mode=pl.Buffered(1)) if nh == 1 else {}

    vmem_limit = int(min(cap - (1 << 20), max(est + (8 << 20), 32 << 20)))

    cost = pl.CostEstimate(
        flops=6 * tokens_p * Ep * Hp,
        transcendentals=tokens_p * Hp,
        bytes_accessed=(2 * tokens_p * Ep * xsize + 3 * Ep * Hp * wsize
                        + (2 * Hp + Ep) * 4),
    )

    out2d = pl.pallas_call(
        swiglu_kernel,
        out_shape=jax.ShapeDtypeStruct((tokens_p, Ep), x.dtype),
        grid_spec=pltpu.PrefetchScalarGridSpec(
            num_scalar_prefetch=0,
            grid=grid,
            in_specs=[
                pl.BlockSpec((tm, Ep), lambda i, h: (i, 0)),             # x tile
                pl.BlockSpec((Ep, th), lambda i, h: (0, h), **wmode),    # w1 gate
                pl.BlockSpec((1, th), lambda i, h: (0, h), **wmode),     # b1 gate
                pl.BlockSpec((Ep, th), lambda i, h: (0, h), **wmode),    # w1 up
                pl.BlockSpec((1, th), lambda i, h: (0, h), **wmode),     # b1 up
                pl.BlockSpec((th, Ep), lambda i, h: (h, 0), **wmode),    # w2
                pl.BlockSpec((1, Ep), lambda i, h: (0, 0),
                             pipeline_mode=pl.Buffered(1)),              # b2
            ],
            out_specs=pl.BlockSpec((tm, Ep), lambda i, h: (i, 0)),
            scratch_shapes=[pltpu.VMEM((tm, Ep), jnp.float32)],
        ),
        compiler_params=pltpu.CompilerParams(
            dimension_semantics=("parallel", "arbitrary"),
            vmem_limit_bytes=vmem_limit,
        ),
        cost_estimate=cost,
    )(x2d, params["w1g"], params["b1g"], params["w1u"], params["b1u"],
      params["w2"], params["b2"])

    return out2d[:tokens, :E].reshape(orig_shape)


def swiglu_ref(x, w1, b1, w2, b2):
    h = jnp.einsum("...e,ef->...f", x, w1) + b1
    H = w2.shape[0]
    x1, x2 = h[..., :H], h[..., H:]
    return jnp.einsum("...h,he->...e", x1 * jax.nn.sigmoid(x1) * x2, w2) + b2


if __name__ == "__main__":
    # config.embed_dim = 32, config.hidden_dim = 64
    B, S, E, H = 2, 8, 32, 64

    key = jax.random.PRNGKey(0)
    kx, kw1, kb1, kw2, kb2 = jax.random.split(key, 5)

    x = jax.random.normal(kx, (B, S, E), dtype=jnp.float32)
    # deterministic "xavier-ish" init, math layout (in, out)
    w1 = jax.random.normal(kw1, (E, 2 * H), dtype=jnp.float32) * (1.0 / jnp.sqrt(E))
    b1 = jax.random.normal(kb1, (2 * H,), dtype=jnp.float32) * 0.01
    w2 = jax.random.normal(kw2, (H, E), dtype=jnp.float32) * (1.0 / jnp.sqrt(H))
    b2 = jax.random.normal(kb2, (E,), dtype=jnp.float32) * 0.01

    ref = swiglu_ref(x, w1, b1, w2, b2)

    # Exact-parity path: f32 weights, f32 MXU.
    params_f32 = prepare_swiglu_params(w1, b1, w2, b2)       # one-time prep
    out = swiglu_pallas(x, params_f32)
    jax.block_until_ready(out)
    assert out.shape == (B, S, E)
    assert jnp.allclose(out, ref, atol=1e-4, rtol=1e-4), "f32 path mismatch"

    # Production path: bf16 weights into the MXU, f32 accumulation / SiLU.
    params_bf16 = prepare_swiglu_params(w1, b1, w2, b2, param_dtype=jnp.bfloat16)
    out_bf16 = swiglu_pallas(x, params_bf16)
    jax.block_until_ready(out_bf16)
    assert jnp.allclose(out_bf16, ref, atol=1e-1, rtol=1e-1), "bf16 path mismatch"

    print("KERNEL_OK")
</pallas_src>

<mosaic_0001>
module attributes {stable_mosaic.version = 11 : i64} {
  func.func @swiglu_kernel(%arg0: i32, %arg1: i32, %arg2: memref<16x128xf32, #tpu.memory_space<vmem>>, %arg3: memref<128x128xf32, #tpu.memory_space<vmem>>, %arg4: memref<1x128xf32, #tpu.memory_space<vmem>>, %arg5: memref<128x128xf32, #tpu.memory_space<vmem>>, %arg6: memref<1x128xf32, #tpu.memory_space<vmem>>, %arg7: memref<128x128xf32, #tpu.memory_space<vmem>>, %arg8: memref<1x128xf32, #tpu.memory_space<vmem>>, %arg9: memref<16x128xf32, #tpu.memory_space<vmem>>, %arg10: memref<16x128xf32, #tpu.memory_space<vmem>>) attributes {dimension_semantics = [#tpu.dimension_semantics<parallel>, #tpu.dimension_semantics<arbitrary>], iteration_bounds = array<i64: 1, 1>, scalar_prefetch = 0 : i64, scratch_operands = 1 : i64, tpu.core_type = #tpu.core_type<tc>, window_params = [{transform_indices = @transform_0, window_bounds = array<i64: 16, 128>}, {pipeline_mode = #tpu.pipeline_mode<synchronous>, transform_indices = @transform_1, window_bounds = array<i64: 128, 128>}, {pipeline_mode = #tpu.pipeline_mode<synchronous>, transform_indices = @transform_2, window_bounds = array<i64: 1, 128>}, {pipeline_mode = #tpu.pipeline_mode<synchronous>, transform_indices = @transform_3, window_bounds = array<i64: 128, 128>}, {pipeline_mode = #tpu.pipeline_mode<synchronous>, transform_indices = @transform_4, window_bounds = array<i64: 1, 128>}, {pipeline_mode = #tpu.pipeline_mode<synchronous>, transform_indices = @transform_5, window_bounds = array<i64: 128, 128>}, {pipeline_mode = #tpu.pipeline_mode<synchronous>, transform_indices = @transform_6, window_bounds = array<i64: 1, 128>}, {transform_indices = @transform_7, window_bounds = array<i64: 16, 128>}]} {
    %c0_i32 = arith.constant 0 : i32
    %0 = arith.cmpi eq, %arg1, %c0_i32 : i32
    %1 = arith.extui %0 : i1 to i32
    %c0_i32_0 = arith.constant 0 : i32
    %2 = arith.cmpi ne, %1, %c0_i32_0 : i32
    scf.if %2 {
      %cst_21 = arith.constant 0.000000e+00 : f32
      %29 = vector.broadcast %cst_21 : f32 to vector<16x128xf32>
      %c0_22 = arith.constant 0 : index
      %c0_23 = arith.constant 0 : index
      %30 = vector.load %arg10[%c0_22, %c0_23] : memref<16x128xf32, #tpu.memory_space<vmem>>, vector<16x128xf32>
      tpu.vector_store %arg10[%c0_22, %c0_23], %29 {strides = array<i32>} : memref<16x128xf32, #tpu.memory_space<vmem>>, vector<16x128xf32>,
    } else {
    }
    %c0 = arith.constant 0 : index
    %c0_1 = arith.constant 0 : index
    %3 = vector.load %arg2[%c0, %c0_1] : memref<16x128xf32, #tpu.memory_space<vmem>>, vector<16x128xf32>
    %c0_2 = arith.constant 0 : index
    %c0_3 = arith.constant 0 : index
    %4 = vector.load %arg3[%c0_2, %c0_3] : memref<128x128xf32, #tpu.memory_space<vmem>>, vector<128x128xf32>
    %cst = arith.constant dense<0.000000e+00> : vector<16x128xf32>
    %5 = tpu.matmul %3, %4, %cst {dimension_numbers = #tpu.dot_dimension_numbers<[1], [0], [0], [1], [0, 0, 1, 1], [], []>} : vector<16x128xf32>, vector<128x128xf32>, vector<16x128xf32> -> vector<16x128xf32>
    %c0_4 = arith.constant 0 : index
    %c0_5 = arith.constant 0 : index
    %6 = vector.load %arg4[%c0_4, %c0_5] : memref<1x128xf32, #tpu.memory_space<vmem>>, vector<1x128xf32>
    %7 = vector.broadcast %6 : vector<1x128xf32> to vector<16x128xf32>
    %8 = arith.addf %5, %7 : vector<16x128xf32>
    %c0_6 = arith.constant 0 : index
    %c0_7 = arith.constant 0 : index
    %9 = vector.load %arg5[%c0_6, %c0_7] : memref<128x128xf32, #tpu.memory_space<vmem>>, vector<128x128xf32>
    %cst_8 = arith.constant dense<0.000000e+00> : vector<16x128xf32>
    %10 = tpu.matmul %3, %9, %cst_8 {dimension_numbers = #tpu.dot_dimension_numbers<[1], [0], [0], [1], [0, 0, 1, 1], [], []>} : vector<16x128xf32>, vector<128x128xf32>, vector<16x128xf32> -> vector<16x128xf32>
    %c0_9 = arith.constant 0 : index
    %c0_10 = arith.constant 0 : index
    %11 = vector.load %arg6[%c0_9, %c0_10] : memref<1x128xf32, #tpu.memory_space<vmem>>, vector<1x128xf32>
    %12 = vector.broadcast %11 : vector<1x128xf32> to vector<16x128xf32>
    %13 = arith.addf %10, %12 : vector<16x128xf32>
    %14 = arith.negf %8 : vector<16x128xf32>
    %15 = math.exp %14 : vector<16x128xf32>
    %cst_11 = arith.constant 1.000000e+00 : f32
    %16 = vector.broadcast %cst_11 : f32 to vector<16x128xf32>
    %17 = arith.addf %16, %15 : vector<16x128xf32>
    %18 = arith.divf %16, %17 : vector<16x128xf32>
    %19 = arith.mulf %8, %18 : vector<16x128xf32>
    %20 = arith.mulf %19, %13 : vector<16x128xf32>
    %c0_12 = arith.constant 0 : index
    %c0_13 = arith.constant 0 : index
    %21 = vector.load %arg10[%c0_12, %c0_13] : memref<16x128xf32, #tpu.memory_space<vmem>>, vector<16x128xf32>
    %c0_14 = arith.constant 0 : index
    %c0_15 = arith.constant 0 : index
    %22 = vector.load %arg7[%c0_14, %c0_15] : memref<128x128xf32, #tpu.memory_space<vmem>>, vector<128x128xf32>
    %cst_16 = arith.constant dense<0.000000e+00> : vector<16x128xf32>
    %23 = tpu.matmul %20, %22, %cst_16 {dimension_numbers = #tpu.dot_dimension_numbers<[1], [0], [0], [1], [0, 0, 1, 1], [], []>} : vector<16x128xf32>, vector<128x128xf32>, vector<16x128xf32> -> vector<16x128xf32>
    %24 = arith.addf %21, %23 : vector<16x128xf32>
    %c0_17 = arith.constant 0 : index
    %c0_18 = arith.constant 0 : index
    %25 = vector.load %arg10[%c0_17, %c0_18] : memref<16x128xf32, #tpu.memory_space<vmem>>, vector<16x128xf32>
    tpu.vector_store %arg10[%c0_17, %c0_18], %24 {strides = array<i32>} : memref<16x128xf32, #tpu.memory_space<vmem>>, vector<16x128xf32>,
    %c0_i32_19 = arith.constant 0 : i32
    %26 = arith.cmpi eq, %arg1, %c0_i32_19 : i32
    %27 = arith.extui %26 : i1 to i32
    %c0_i32_20 = arith.constant 0 : i32
    %28 = arith.cmpi ne, %27, %c0_i32_20 : i32
    scf.if %28 {
      %c0_21 = arith.constant 0 : index
      %c0_22 = arith.constant 0 : index
      %29 = vector.load %arg10[%c0_21, %c0_22] : memref<16x128xf32, #tpu.memory_space<vmem>>, vector<16x128xf32>
      %c0_23 = arith.constant 0 : index
      %c0_24 = arith.constant 0 : index
      %30 = vector.load %arg8[%c0_23, %c0_24] : memref<1x128xf32, #tpu.memory_space<vmem>>, vector<1x128xf32>
      %31 = vector.broadcast %30 : vector<1x128xf32> to vector<16x128xf32>
      %32 = arith.addf %29, %31 : vector<16x128xf32>
      %c0_25 = arith.constant 0 : index
      %c0_26 = arith.constant 0 : index
      %33 = vector.load %arg9[%c0_25, %c0_26] : memref<16x128xf32, #tpu.memory_space<vmem>>, vector<16x128xf32>
      tpu.vector_store %arg9[%c0_25, %c0_26], %32 {strides = array<i32>} : memref<16x128xf32, #tpu.memory_space<vmem>>, vector<16x128xf32>,
    } else {
    }
    return
  }
  func.func @transform_0(%arg0: i32, %arg1: i32) -> (i32, i32) {
    %c0_i32 = arith.constant 0 : i32
    %c0_i32_0 = arith.constant 0 : i32
    return %arg0, %c0_i32 : i32, i32
  }
  func.func @transform_1(%arg0: i32, %arg1: i32) -> (i32, i32) {
    %c0_i32 = arith.constant 0 : i32
    %c0_i32_0 = arith.constant 0 : i32
    return %c0_i32, %arg1 : i32, i32
  }
  func.func @transform_2(%arg0: i32, %arg1: i32) -> (i32, i32) {
    %c0_i32 = arith.constant 0 : i32
    %c0_i32_0 = arith.constant 0 : i32
    return %c0_i32, %arg1 : i32, i32
  }
  func.func @transform_3(%arg0: i32, %arg1: i32) -> (i32, i32) {
    %c0_i32 = arith.constant 0 : i32
    %c0_i32_0 = arith.constant 0 : i32
    return %c0_i32, %arg1 : i32, i32
  }
  func.func @transform_4(%arg0: i32, %arg1: i32) -> (i32, i32) {
    %c0_i32 = arith.constant 0 : i32
    %c0_i32_0 = arith.constant 0 : i32
    return %c0_i32, %arg1 : i32, i32
  }
  func.func @transform_5(%arg0: i32, %arg1: i32) -> (i32, i32) {
    %c0_i32 = arith.constant 0 : i32
    %c0_i32_0 = arith.constant 0 : i32
    return %arg1, %c0_i32 : i32, i32
  }
  func.func @transform_6(%arg0: i32, %arg1: i32) -> (i32, i32) {
    %c0_i32 = arith.constant 0 : i32
    %c0_i32_0 = arith.constant 0 : i32
    %c0_i32_1 = arith.constant 0 : i32
    return %c0_i32, %c0_i32_0 : i32, i32
  }
  func.func @transform_7(%arg0: i32, %arg1: i32) -> (i32, i32) {
    %c0_i32 = arith.constant 0 : i32
    %c0_i32_0 = arith.constant 0 : i32
    return %arg0, %c0_i32 : i32, i32
  }
}

</mosaic_0001>

<llo_original>
// kernel: tpu_custom_call.1
$region0: #{tpu_custom_call.1}
  #allocation0 [shape = 'u32[]', space=smem, size = 0x4, offset = 0x4, fixed_abs, tag = 'smem constant byte address 0x4 - core index']
  #allocation1 [shape = 'u32[144,128]{1,0:T(1,128)}', space=vmem, size = 0x12000, scoped, tag = 'internal scratch']
  #allocation2 [shape = 'f32[16,128]{1,0:T(8,128)}', space=vmem, size = 0x2000, scoped, tag = 'scratch operand']
  %s0 = inlined_call_operand.hbm [shape: f32[16,128], index: 0, kind: input, shape index: {}]
  %s1 = inlined_call_operand.hbm [shape: f32[128,128], index: 1, kind: input, shape index: {}]
  %s2 = inlined_call_operand.vmem [shape: f32[1,128], index: 2, kind: input, shape index: {}]
  %s3 = inlined_call_operand.hbm [shape: f32[128,128], index: 3, kind: input, shape index: {}]
  %s4 = inlined_call_operand.vmem [shape: f32[1,128], index: 4, kind: input, shape index: {}]
  %s5 = inlined_call_operand.hbm [shape: f32[128,128], index: 5, kind: input, shape index: {}]
  %s6 = inlined_call_operand.vmem [shape: f32[1,128], index: 6, kind: input, shape index: {}]
  %s7 = inlined_call_operand.hbm [shape: f32[16,128], index: 7, kind: output, shape index: {}]
  %s8 = sld [smem:[#allocation0]]
  $region62: #{tpu_custom_call.1} parent=0
    _
  %s10 = ssub.s32 1, %s8
  %s11 = scalar_select 0, %s10, %s8
  $region1: #{tpu_custom_call.1} parent=0
    #allocation3 [shape = 'u8[8192]{0}', space=vmem, size = 0x2000, scoped, tag = 'input window, operand 0, single buffered']
    #allocation4 [shape = 's32[1]{0}', space=sflag, size = 0x4, scoped, tag = 'scoped memory for tpu_custom_call.1']
    #allocation5 [shape = 's32[1]{0}', space=sflag, size = 0x4, scoped, tag = 'scoped memory for tpu_custom_call.1']
    #allocation6 [shape = 'u8[65536]{0}', space=vmem, size = 0x10000, scoped, tag = 'input window, operand 1, single buffered']
    #allocation7 [shape = 's32[1]{0}', space=sflag, size = 0x4, scoped, tag = 'scoped memory for tpu_custom_call.1']
    #allocation8 [shape = 'u8[65536]{0}', space=vmem, size = 0x10000, scoped, tag = 'input window, operand 3, single buffered']
    #allocation9 [shape = 'u8[65536]{0}', space=vmem, size = 0x10000, scoped, tag = 'input window, operand 5, single buffered']
    #allocation10 [shape = 's32[1]{0}', space=sflag, size = 0x4, scoped, tag = 'scoped memory for tpu_custom_call.1']
    #allocation11 [shape = 'u8[8192]{0}', space=vmem, size = 0x2000, scoped, tag = 'output window, operand 0, single buffered']
    %12 = vsyncpa [#allocation4], 0
    %13 = vsyncpa [#allocation7], 0
    %14 = vsyncpa [#allocation10], 0
    %15 = vsyncpa [#allocation5], 0
    // Predicated region
    $region2: #{tpu_custom_call.1} parent=1 // pred_check
      _
    $region3: #{tpu_custom_call.1} parent=1 // pred_check_branch
      %17 = sbr.rel (0) target = $region5
    $region4: #{tpu_custom_call.1} parent=1 // pred_region
      %s19 = ssub.s32 256, 256
      %20 = vsyncadd [#allocation4], %s19
      %s21 = sshll.u32 [#allocation3], 4
      %s22 = int_to_ptr.vmem [resolvable:$true] %s21
      %27 = dma.hbm_to_vmem [thread:$0]  %s0, 256, %s22, [#allocation4], 128, 128, 8
    $region5: #{tpu_custom_call.1} parent=1 // pred_fallthru
      _
    // Predicated region
    $region6: #{tpu_custom_call.1} parent=1 // pred_check
      _
    $region7: #{tpu_custom_call.1} parent=1 // pred_check_branch
      %29 = sbr.rel (0) target = $region9
    $region8: #{tpu_custom_call.1} parent=1 // pred_region
      %s31 = ssub.s32 2048, 2048
      %32 = vsyncadd [#allocation7], %s31
      %s33 = sshll.u32 [#allocation6], 4
      %s34 = int_to_ptr.vmem [resolvable:$true] %s33
      %39 = dma.hbm_to_vmem [thread:$0]  %s1, 2048, %s34, [#allocation7], 128, 128, 8
    $region9: #{tpu_custom_call.1} parent=1 // pred_fallthru
      _
    // Predicated region
    $region10: #{tpu_custom_call.1} parent=1 // pred_check
      _
    $region11: #{tpu_custom_call.1} parent=1 // pred_check_branch
      %41 = sbr.rel (0) target = $region13
    $region12: #{tpu_custom_call.1} parent=1 // pred_region
      _
    $region13: #{tpu_custom_call.1} parent=1 // pred_fallthru
      _
    // Predicated region
    $region14: #{tpu_custom_call.1} parent=1 // pred_check
      _
    $region15: #{tpu_custom_call.1} parent=1 // pred_check_branch
      %43 = sbr.rel (0) target = $region17
    $region16: #{tpu_custom_call.1} parent=1 // pred_region
      %s45 = ssub.s32 2048, 2048
      %46 = vsyncadd [#allocation7], %s45
      %s47 = sshll.u32 [#allocation8], 4
      %s48 = int_to_ptr.vmem [resolvable:$true] %s47
      %53 = dma.hbm_to_vmem [thread:$0]  %s3, 2048, %s48, [#allocation7], 128, 128, 8
    $region17: #{tpu_custom_call.1} parent=1 // pred_fallthru
      _
    // Predicated region
    $region18: #{tpu_custom_call.1} parent=1 // pred_check
      _
    $region19: #{tpu_custom_call.1} parent=1 // pred_check_branch
      %55 = sbr.rel (0) target = $region21
    $region20: #{tpu_custom_call.1} parent=1 // pred_region
      _
    $region21: #{tpu_custom_call.1} parent=1 // pred_fallthru
      _
    // Predicated region
    $region22: #{tpu_custom_call.1} parent=1 // pred_check
      _
    $region23: #{tpu_custom_call.1} parent=1 // pred_check_branch
      %57 = sbr.rel (0) target = $region25
    $region24: #{tpu_custom_call.1} parent=1 // pred_region
      %s59 = ssub.s32 2048, 2048
      %60 = vsyncadd [#allocation10], %s59
      %s61 = sshll.u32 [#allocation9], 4
      %s62 = int_to_ptr.vmem [resolvable:$true] %s61
      %67 = dma.hbm_to_vmem [thread:$0]  %s5, 2048, %s62, [#allocation10], 128, 128, 8
    $region25: #{tpu_custom_call.1} parent=1 // pred_fallthru
      _
    // Predicated region
    $region26: #{tpu_custom_call.1} parent=1 // pred_check
      _
    $region27: #{tpu_custom_call.1} parent=1 // pred_check_branch
      %69 = sbr.rel (0) target = $region29
    $region28: #{tpu_custom_call.1} parent=1 // pred_region
      _
    $region29: #{tpu_custom_call.1} parent=1 // pred_fallthru
      _
    // Predicated region
    $region30: #{tpu_custom_call.1} parent=1 // pred_check
      _
    $region31: #{tpu_custom_call.1} parent=1 // pred_check_branch
      %71 = sbr.rel (0) target = $region33
    $region32: #{tpu_custom_call.1} parent=1 // pred_region
      %72 = dma.done [#allocation4], 256
    $region33: #{tpu_custom_call.1} parent=1 // pred_fallthru
      _
    // Predicated region
    $region34: #{tpu_custom_call.1} parent=1 // pred_check
      _
    $region35: #{tpu_custom_call.1} parent=1 // pred_check_branch
      %74 = sbr.rel (0) target = $region37
    $region36: #{tpu_custom_call.1} parent=1 // pred_region
      %75 = dma.done [#allocation7], 2048
    $region37: #{tpu_custom_call.1} parent=1 // pred_fallthru
      _
    // Predicated region
    $region38: #{tpu_custom_call.1} parent=1 // pred_check
      _
    $region39: #{tpu_custom_call.1} parent=1 // pred_check_branch
      %77 = sbr.rel (0) target = $region41
    $region40: #{tpu_custom_call.1} parent=1 // pred_region
      %78 = dma.done [#allocation7], 2048
    $region41: #{tpu_custom_call.1} parent=1 // pred_fallthru
      _
    // Predicated region
    $region42: #{tpu_custom_call.1} parent=1 // pred_check
      _
    $region43: #{tpu_custom_call.1} parent=1 // pred_check_branch
      %80 = sbr.rel (0) target = $region45
    $region44: #{tpu_custom_call.1} parent=1 // pred_region
      %81 = dma.done [#allocation10], 2048
    $region45: #{tpu_custom_call.1} parent=1 // pred_fallthru
      _
    %p82 = scmp.eq.s32.totalorder 0, 0
    // Predicated region
    $region46: #{tpu_custom_call.1} parent=1 // pred_check
      %p83 = pneg %p82
    $region47: #{tpu_custom_call.1} parent=1 // pred_check_branch
      %85 = sbr.rel (%p83) target = $region49
    $region48: #{tpu_custom_call.1} parent=1 // pred_region
      %86 = vst [vmem:[#allocation2] sm:$0xff] 0.0
      %87 = vst [vmem:[#allocation2 + $0x8] sm:$0xff] 0.0
    $region49: #{tpu_custom_call.1} parent=1 // pred_fallthru
      _
    %v88 = vld [vmem:[#allocation3] sm:$0xff]
    %v89 = vld [vmem:[#allocation3 + $0x8] sm:$0xff]
    %v90 = vld [vmem:[#allocation6] sm:$0xff]
    %v91 = vld [vmem:[#allocation6 + $0x8] sm:$0xff]
    %v92 = vld [vmem:[#allocation6 + $0x10] sm:$0xff]
    %v93 = vld [vmem:[#allocation6 + $0x18] sm:$0xff]
    %v94 = vld [vmem:[#allocation6 + $0x20] sm:$0xff]
    %v95 = vld [vmem:[#allocation6 + $0x28] sm:$0xff]
    %v96 = vld [vmem:[#allocation6 + $0x30] sm:$0xff]
    %v97 = vld [vmem:[#allocation6 + $0x38] sm:$0xff]
    %v98 = vld [vmem:[#allocation6 + $0x40] sm:$0xff]
    %v99 = vld [vmem:[#allocation6 + $0x48] sm:$0xff]
    %v100 = vld [vmem:[#allocation6 + $0x50] sm:$0xff]
    %v101 = vld [vmem:[#allocation6 + $0x58] sm:$0xff]
    %v102 = vld [vmem:[#allocation6 + $0x60] sm:$0xff]
    %v103 = vld [vmem:[#allocation6 + $0x68] sm:$0xff]
    %v104 = vld [vmem:[#allocation6 + $0x70] sm:$0xff]
    %v105 = vld [vmem:[#allocation6 + $0x78] sm:$0xff]
    %v106 = vld [vmem:[%s2] sm:$0x1]
    %v108 = vlaneseq
    %v109 = vshrl.u32 %v108, 7
    %v110 = vsub.s32 0, %v109
    %v111 = vrot.slane %v106, %v110
    %113 = vmatprep.subr.mxu0 0.0
    %114 = vmatpush1.msra.mxu0 %v90
    %115 = vmatprep.subr.mxu0 0.0
    %116 = vmatpush1.msra.mxu0 %v91
    %117 = vmatprep.subr.mxu0 0.0
    %118 = vmatpush1.msra.mxu0 %v92
    %119 = vmatprep.subr.mxu0 0.0
    %120 = vmatpush1.msra.mxu0 %v93
    %121 = vmatprep.subr.mxu0 0.0
    %122 = vmatpush1.msra.mxu0 %v94
    %123 = vmatprep.subr.mxu0 0.0
    %124 = vmatpush1.msra.mxu0 %v95
    %125 = vmatprep.subr.mxu0 0.0
    %126 = vmatpush1.msra.mxu0 %v96
    %127 = vmatprep.subr.mxu0 0.0
    %128 = vmatpush1.msra.mxu0 %v97
    %129 = vmatprep.subr.mxu0 0.0
    %130 = vmatpush1.msra.mxu0 %v98
    %131 = vmatprep.subr.mxu0 0.0
    %132 = vmatpush1.msra.mxu0 %v99
    %133 = vmatprep.subr.mxu0 0.0
    %134 = vmatpush1.msra.mxu0 %v100
    %135 = vmatprep.subr.mxu0 0.0
    %136 = vmatpush1.msra.mxu0 %v101
    %137 = vmatprep.subr.mxu0 0.0
    %138 = vmatpush1.msra.mxu0 %v102
    %139 = vmatprep.subr.mxu0 0.0
    %140 = vmatpush1.msra.mxu0 %v103
    %141 = vmatprep.subr.mxu0 0.0
    %142 = vmatpush1.msra.mxu0 %v104
    %143 = vmatprep.subr.mxu0 0.0
    %144 = vmatpush1.msra.mxu0 %v105
    %145 = vmatprep.subr.mxu0 0.0
    %146 = vmatpush1.msra.mxu0 0.0
    %147 = vmatprep.subr.mxu0 0.0
    %148 = vmatpush1.msra.mxu0 0.0
    %149 = vmatprep.subr.mxu0 0.0
    %150 = vmatpush1.msra.mxu0 0.0
    %151 = vmatprep.subr.mxu0 0.0
    %152 = vmatpush1.msra.mxu0 0.0
    %153 = vmatprep.subr.mxu0 0.0
    %154 = vmatpush1.msra.mxu0 0.0
    %155 = vmatprep.subr.mxu0 0.0
    %156 = vmatpush1.msra.mxu0 0.0
    %157 = vmatprep.subr.mxu0 0.0
    %158 = vmatpush1.msra.mxu0 0.0
    %159 = vmatprep.subr.mxu0 0.0
    %160 = vmatpush1.msra.mxu0 0.0
    %161 = vmatprep.subr.mxu0 0.0
    %162 = vmatpush1.msra.mxu0 0.0
    %163 = vmatprep.subr.mxu0 0.0
    %164 = vmatpush1.msra.mxu0 0.0
    %165 = vmatprep.subr.mxu0 0.0
    %166 = vmatpush1.msra.mxu0 0.0
    %167 = vmatprep.subr.mxu0 0.0
    %168 = vmatpush1.msra.mxu0 0.0
    %169 = vmatprep.subr.mxu0 0.0
    %170 = vmatpush1.msra.mxu0 0.0
    %171 = vmatprep.subr.mxu0 0.0
    %172 = vmatpush1.msra.mxu0 0.0
    %173 = vmatprep.subr.mxu0 0.0
    %174 = vmatpush1.msra.mxu0 0.0
    %175 = vmatprep.subr.mxu0 0.0
    %176 = vmatpush1.msra.mxu0 0.0
    %177 = vmatprep.mubr.f32.mxu0 0.0
    %178 = vmatmul.mubr.f32.gmra.mrb[0].mxu0 %v88
    %v179 = vpop.f32.mrb[0].mxu0
    %v180 = vadd.f32 %v111, %v179
    %v181 = vpop.f32.mrb[0].mxu0
    %182 = vmatprep.mubr.f32.mxu0 0.0
    %183 = vmatmul.mubr.f32.gmra.mrb[0].mxu0 %v89
    %v184 = vpop.f32.mrb[0].mxu0
    %v185 = vadd.f32 %v111, %v184
    %v186 = vpop.f32.mrb[0].mxu0
    %187 = vdwg.mxu0
    %v188 = vld [vmem:[#allocation8] sm:$0xff]
    %v189 = vld [vmem:[#allocation8 + $0x8] sm:$0xff]
    %v190 = vld [vmem:[#allocation8 + $0x10] sm:$0xff]
    %v191 = vld [vmem:[#allocation8 + $0x18] sm:$0xff]
    %v192 = vld [vmem:[#allocation8 + $0x20] sm:$0xff]
    %v193 = vld [vmem:[#allocation8 + $0x28] sm:$0xff]
    %v194 = vld [vmem:[#allocation8 + $0x30] sm:$0xff]
    %v195 = vld [vmem:[#allocation8 + $0x38] sm:$0xff]
    %v196 = vld [vmem:[#allocation8 + $0x40] sm:$0xff]
    %v197 = vld [vmem:[#allocation8 + $0x48] sm:$0xff]
    %v198 = vld [vmem:[#allocation8 + $0x50] sm:$0xff]
    %v199 = vld [vmem:[#allocation8 + $0x58] sm:$0xff]
    %v200 = vld [vmem:[#allocation8 + $0x60] sm:$0xff]
    %v201 = vld [vmem:[#allocation8 + $0x68] sm:$0xff]
    %v202 = vld [vmem:[#allocation8 + $0x70] sm:$0xff]
    %v203 = vld [vmem:[#allocation8 + $0x78] sm:$0xff]
    %v204 = vld [vmem:[%s4] sm:$0x1]
    %v206 = vlaneseq
    %v207 = vshrl.u32 %v206, 7
    %v208 = vsub.s32 0, %v207
    %v209 = vrot.slane %v204, %v208
    %211 = vmatprep.subr.mxu0 0.0
    %212 = vmatpush1.msra.mxu0 %v188
    %213 = vmatprep.subr.mxu0 0.0
    %214 = vmatpush1.msra.mxu0 %v189
    %215 = vmatprep.subr.mxu0 0.0
    %216 = vmatpush1.msra.mxu0 %v190
    %217 = vmatprep.subr.mxu0 0.0
    %218 = vmatpush1.msra.mxu0 %v191
    %219 = vmatprep.subr.mxu0 0.0
    %220 = vmatpush1.msra.mxu0 %v192
    %221 = vmatprep.subr.mxu0 0.0
    %222 = vmatpush1.msra.mxu0 %v193
    %223 = vmatprep.subr.mxu0 0.0
    %224 = vmatpush1.msra.mxu0 %v194
    %225 = vmatprep.subr.mxu0 0.0
    %226 = vmatpush1.msra.mxu0 %v195
    %227 = vmatprep.subr.mxu0 0.0
    %228 = vmatpush1.msra.mxu0 %v196
    %229 = vmatprep.subr.mxu0 0.0
    %230 = vmatpush1.msra.mxu0 %v197
    %231 = vmatprep.subr.mxu0 0.0
    %232 = vmatpush1.msra.mxu0 %v198
    %233 = vmatprep.subr.mxu0 0.0
    %234 = vmatpush1.msra.mxu0 %v199
    %235 = vmatprep.subr.mxu0 0.0
    %236 = vmatpush1.msra.mxu0 %v200
    %237 = vmatprep.subr.mxu0 0.0
    %238 = vmatpush1.msra.mxu0 %v201
    %239 = vmatprep.subr.mxu0 0.0
    %240 = vmatpush1.msra.mxu0 %v202
    %241 = vmatprep.subr.mxu0 0.0
    %242 = vmatpush1.msra.mxu0 %v203
    %243 = vmatprep.subr.mxu0 0.0
    %244 = vmatpush1.msra.mxu0 0.0
    %245 = vmatprep.subr.mxu0 0.0
    %246 = vmatpush1.msra.mxu0 0.0
    %247 = vmatprep.subr.mxu0 0.0
    %248 = vmatpush1.msra.mxu0 0.0
    %249 = vmatprep.subr.mxu0 0.0
    %250 = vmatpush1.msra.mxu0 0.0
    %251 = vmatprep.subr.mxu0 0.0
    %252 = vmatpush1.msra.mxu0 0.0
    %253 = vmatprep.subr.mxu0 0.0
    %254 = vmatpush1.msra.mxu0 0.0
    %255 = vmatprep.subr.mxu0 0.0
    %256 = vmatpush1.msra.mxu0 0.0
    %257 = vmatprep.subr.mxu0 0.0
    %258 = vmatpush1.msra.mxu0 0.0
    %259 = vmatprep.subr.mxu0 0.0
    %260 = vmatpush1.msra.mxu0 0.0
    %261 = vmatprep.subr.mxu0 0.0
    %262 = vmatpush1.msra.mxu0 0.0
    %263 = vmatprep.subr.mxu0 0.0
    %264 = vmatpush1.msra.mxu0 0.0
    %265 = vmatprep.subr.mxu0 0.0
    %266 = vmatpush1.msra.mxu0 0.0
    %267 = vmatprep.subr.mxu0 0.0
    %268 = vmatpush1.msra.mxu0 0.0
    %269 = vmatprep.subr.mxu0 0.0
    %270 = vmatpush1.msra.mxu0 0.0
    %271 = vmatprep.subr.mxu0 0.0
    %272 = vmatpush1.msra.mxu0 0.0
    %273 = vmatprep.subr.mxu0 0.0
    %274 = vmatpush1.msra.mxu0 0.0
    %275 = vmatprep.mubr.f32.mxu0 0.0
    %276 = vmatmul.mubr.f32.gmra.mrb[0].mxu0 %v88
    %v277 = vpop.f32.mrb[0].mxu0
    %v278 = vadd.f32 %v209, %v277
    %v279 = vpop.f32.mrb[0].mxu0
    %280 = vmatprep.mubr.f32.mxu0 0.0
    %281 = vmatmul.mubr.f32.gmra.mrb[0].mxu0 %v89
    %v282 = vpop.f32.mrb[0].mxu0
    %v283 = vadd.f32 %v209, %v282
    %v284 = vpop.f32.mrb[0].mxu0
    %285 = vdwg.mxu0
    %v286 = vxor.u32 %v180, 2147483648
    %v287 = vxor.u32 %v185, 2147483648
    %v288 = vmul.f32 %v286, 1.442695
    %v289 = vpow.pop %v288
    %v290 = vmul.f32 %v287, 1.442695
    %v291 = vpow.pop %v290
    %v292 = vadd.f32 %v289, 1.0
    %v293 = vadd.f32 %v291, 1.0
    %v294 = vrcp.pop %v292
    %v295 = vmul.f32 1.0, %v294
    %v296 = vrcp.pop %v293
    %v297 = vmul.f32 1.0, %v296
    %v298 = vmul.f32 %v180, %v295
    %v299 = vmul.f32 %v185, %v297
    %v300 = vmul.f32 %v298, %v278
    %v301 = vmul.f32 %v299, %v283
    %v302 = vld [vmem:[#allocation2] sm:$0xff]
    %v303 = vld [vmem:[#allocation2 + $0x8] sm:$0xff]
    %v304 = vld [vmem:[#allocation9] sm:$0xff]
    %v305 = vld [vmem:[#allocation9 + $0x8] sm:$0xff]
    %v306 = vld [vmem:[#allocation9 + $0x10] sm:$0xff]
    %v307 = vld [vmem:[#allocation9 + $0x18] sm:$0xff]
    %v308 = vld [vmem:[#allocation9 + $0x20] sm:$0xff]
    %v309 = vld [vmem:[#allocation9 + $0x28] sm:$0xff]
    %v310 = vld [vmem:[#allocation9 + $0x30] sm:$0xff]
    %v311 = vld [vmem:[#allocation9 + $0x38] sm:$0xff]
    %v312 = vld [vmem:[#allocation9 + $0x40] sm:$0xff]
    %v313 = vld [vmem:[#allocation9 + $0x48] sm:$0xff]
    %v314 = vld [vmem:[#allocation9 + $0x50] sm:$0xff]
    %v315 = vld [vmem:[#allocation9 + $0x58] sm:$0xff]
    %v316 = vld [vmem:[#allocation9 + $0x60] sm:$0xff]
    %v317 = vld [vmem:[#allocation9 + $0x68] sm:$0xff]
    %v318 = vld [vmem:[#allocation9 + $0x70] sm:$0xff]
    %v319 = vld [vmem:[#allocation9 + $0x78] sm:$0xff]
    %320 = vmatprep.subr.mxu0 0.0
    %321 = vmatpush1.msra.mxu0 %v304
    %322 = vmatprep.subr.mxu0 0.0
    %323 = vmatpush1.msra.mxu0 %v305
    %324 = vmatprep.subr.mxu0 0.0
    %325 = vmatpush1.msra.mxu0 %v306
    %326 = vmatprep.subr.mxu0 0.0
    %327 = vmatpush1.msra.mxu0 %v307
    %328 = vmatprep.subr.mxu0 0.0
    %329 = vmatpush1.msra.mxu0 %v308
    %330 = vmatprep.subr.mxu0 0.0
    %331 = vmatpush1.msra.mxu0 %v309
    %332 = vmatprep.subr.mxu0 0.0
    %333 = vmatpush1.msra.mxu0 %v310
    %334 = vmatprep.subr.mxu0 0.0
    %335 = vmatpush1.msra.mxu0 %v311
    %336 = vmatprep.subr.mxu0 0.0
    %337 = vmatpush1.msra.mxu0 %v312
    %338 = vmatprep.subr.mxu0 0.0
    %339 = vmatpush1.msra.mxu0 %v313
    %340 = vmatprep.subr.mxu0 0.0
    %341 = vmatpush1.msra.mxu0 %v314
    %342 = vmatprep.subr.mxu0 0.0
    %343 = vmatpush1.msra.mxu0 %v315
    %344 = vmatprep.subr.mxu0 0.0
    %345 = vmatpush1.msra.mxu0 %v316
    %346 = vmatprep.subr.mxu0 0.0
    %347 = vmatpush1.msra.mxu0 %v317
    %348 = vmatprep.subr.mxu0 0.0
    %349 = vmatpush1.msra.mxu0 %v318
    %350 = vmatprep.subr.mxu0 0.0
    %351 = vmatpush1.msra.mxu0 %v319
    %352 = vmatprep.subr.mxu0 0.0
    %353 = vmatpush1.msra.mxu0 0.0
    %354 = vmatprep.subr.mxu0 0.0
    %355 = vmatpush1.msra.mxu0 0.0
    %356 = vmatprep.subr.mxu0 0.0
    %357 = vmatpush1.msra.mxu0 0.0
    %358 = vmatprep.subr.mxu0 0.0
    %359 = vmatpush1.msra.mxu0 0.0
    %360 = vmatprep.subr.mxu0 0.0
    %361 = vmatpush1.msra.mxu0 0.0
    %362 = vmatprep.subr.mxu0 0.0
    %363 = vmatpush1.msra.mxu0 0.0
    %364 = vmatprep.subr.mxu0 0.0
    %365 = vmatpush1.msra.mxu0 0.0
    %366 = vmatprep.subr.mxu0 0.0
    %367 = vmatpush1.msra.mxu0 0.0
    %368 = vmatprep.subr.mxu0 0.0
    %369 = vmatpush1.msra.mxu0 0.0
    %370 = vmatprep.subr.mxu0 0.0
    %371 = vmatpush1.msra.mxu0 0.0
    %372 = vmatprep.subr.mxu0 0.0
    %373 = vmatpush1.msra.mxu0 0.0
    %374 = vmatprep.subr.mxu0 0.0
    %375 = vmatpush1.msra.mxu0 0.0
    %376 = vmatprep.subr.mxu0 0.0
    %377 = vmatpush1.msra.mxu0 0.0
    %378 = vmatprep.subr.mxu0 0.0
    %379 = vmatpush1.msra.mxu0 0.0
    %380 = vmatprep.subr.mxu0 0.0
    %381 = vmatpush1.msra.mxu0 0.0
    %382 = vmatprep.subr.mxu0 0.0
    %383 = vmatpush1.msra.mxu0 0.0
    %384 = vmatprep.mubr.f32.mxu0 0.0
    %385 = vmatmul.mubr.f32.gmra.mrb[0].mxu0 %v300
    %v386 = vpop.f32.mrb[0].mxu0
    %v387 = vadd.f32 0.0, %v386
    %v388 = vpop.f32.mrb[0].mxu0
    %389 = vmatprep.mubr.f32.mxu0 0.0
    %390 = vmatmul.mubr.f32.gmra.mrb[0].mxu0 %v301
    %v391 = vpop.f32.mrb[0].mxu0
    %v392 = vadd.f32 0.0, %v391
    %v393 = vpop.f32.mrb[0].mxu0
    %394 = vdwg.mxu0
    %v395 = vadd.f32 %v302, %v387
    %v396 = vadd.f32 %v303, %v392
    %397 = vst [vmem:[#allocation2] sm:$0xff] %v395
    %398 = vst [vmem:[#allocation2 + $0x8] sm:$0xff] %v396
    // Predicated region
    $region50: #{tpu_custom_call.1} parent=1 // pred_check
      %p399 = pneg %p82
    $region51: #{tpu_custom_call.1} parent=1 // pred_check_branch
      %401 = sbr.rel (%p399) target = $region53
    $region52: #{tpu_custom_call.1} parent=1 // pred_region
      %v402 = vld [vmem:[#allocation2] sm:$0xff]
      %v403 = vld [vmem:[#allocation2 + $0x8] sm:$0xff]
      %v404 = vld [vmem:[%s6] sm:$0x1]
      %v406 = vlaneseq
      %v407 = vshrl.u32 %v406, 7
      %v408 = vsub.s32 0, %v407
      %v409 = vrot.slane %v404, %v408
      %v411 = vadd.f32 %v402, %v409
      %v412 = vadd.f32 %v403, %v409
      %413 = vst [vmem:[#allocation11] sm:$0xff] %v411
      %414 = vst [vmem:[#allocation11 + $0x8] sm:$0xff] %v412
    $region53: #{tpu_custom_call.1} parent=1 // pred_fallthru
      _
    // Predicated region
    $region54: #{tpu_custom_call.1} parent=1 // pred_check
      _
    $region55: #{tpu_custom_call.1} parent=1 // pred_check_branch
      %416 = sbr.rel (0) target = $region57
    $region56: #{tpu_custom_call.1} parent=1 // pred_region
      %s418 = ssub.s32 256, 256
      %419 = vsyncadd [#allocation5], %s418
      %s420 = sshll.u32 [#allocation11], 4
      %s421 = int_to_ptr.vmem [resolvable:$true] %s420
      %426 = dma.vmem_to_hbm [thread:$0]  %s421, 256, %s7, [#allocation5], 128, 128, 8
    $region57: #{tpu_custom_call.1} parent=1 // pred_fallthru
      _
    // Predicated region
    $region58: #{tpu_custom_call.1} parent=1 // pred_check
      _
    $region59: #{tpu_custom_call.1} parent=1 // pred_check_branch
      %428 = sbr.rel (0) target = $region61
    $region60: #{tpu_custom_call.1} parent=1 // pred_region
      %429 = dma.done [#allocation5], 256
    $region61: #{tpu_custom_call.1} parent=1 // pred_fallthru
      _
    %430 = vsyncpa [#allocation4], 1
    %431 = vsyncpa [#allocation7], 1
    %432 = vsyncpa [#allocation10], 1
    %433 = vsyncpa [#allocation5], 1

</llo_original>
